<compile_context>
chip_gen: v7x
topology: tpu7x:2x2x1
jax: 0.10.0
libtpu: 0.0.40
codegen_flags: <defaults>
</compile_context>

<pallas_src>
import functools

import jax
import jax.numpy as jnp
from jax import lax
from jax.experimental import pallas as pl
from jax.experimental.pallas import tpu as pltpu


def _strengthnet_kernel(x_ref, w1_ref, b1_ref, w2_ref, b2_ref, w3_ref, b3_ref,
                        o_ref, *, chunk):
    """Fused forward for one (tm, in_dim) batch tile.

    MXU operands in the compute dtype (bf16 by default); accumulation, bias adds and
    ReLUs stay in f32 via preferred_element_type. The tile is processed in `chunk`-row
    sub-tiles to bound vreg pressure while keeping the DMA granularity large.
    """
    cdt = w1_ref.dtype
    # Weights/biases are tiny (<=64x64) and VMEM-resident across the whole grid
    # (constant index maps); hoist their loads out of the row-chunk loop.
    w1 = w1_ref[...]
    b1 = b1_ref[...]
    w2 = w2_ref[...]
    b2 = b2_ref[...]
    w3 = w3_ref[...]
    b3 = b3_ref[...]

    n_chunks = x_ref.shape[0] // chunk

    def body(c, carry):
        r0 = pl.multiple_of(c * chunk, chunk)
        # In-kernel cast (free on the VPU under the DMA) instead of a wrapper XLA pass.
        x = x_ref[pl.ds(r0, chunk), :].astype(cdt)
        h1 = jnp.dot(x, w1, preferred_element_type=jnp.float32) + b1
        h1 = jnp.maximum(h1, 0.0).astype(cdt)
        h2 = jnp.dot(h1, w2, preferred_element_type=jnp.float32) + b2
        h2 = jnp.maximum(h2, 0.0).astype(cdt)
        y = jnp.dot(h2, w3, preferred_element_type=jnp.float32) + b3
        o_ref[pl.ds(r0, chunk), :] = y.astype(o_ref.dtype)
        return carry

    lax.fori_loop(0, n_chunks, body, 0, unroll=True)


def prepare_params(params, compute_dtype=jnp.bfloat16):
    """One-time parameter preprocessing, hoisted out of the forward call.

    Weights go to the MXU compute dtype; biases stay f32 as (1, out) rows for the
    f32 epilogue. Weights are stored pre-transposed as (in_features, out_features),
    so the kernel computes y = x @ w + b (== PyTorch's x @ weight.T + bias).
    """
    return {
        "w1": params["w1"].astype(compute_dtype),
        "w2": params["w2"].astype(compute_dtype),
        "w3": params["w3"].astype(compute_dtype),
        "b1": params["b1"].reshape(1, -1).astype(jnp.float32),
        "b2": params["b2"].reshape(1, -1).astype(jnp.float32),
        "b3": params["b3"].reshape(1, -1).astype(jnp.float32),
    }


def _choose_tiles(B, tm, chunk):
    """Pick (tm, chunk, grid_m): tm a multiple of chunk, not oversized for the batch,
    and split into >= 2 grid steps when the batch allows (v7x has 2 TensorCores)."""
    chunk = max(8, (chunk // 8) * 8)
    tm = max(chunk, (tm // chunk) * chunk)
    rounded_b = pl.cdiv(B, chunk) * chunk
    tm = min(tm, rounded_b)
    if B > chunk and pl.cdiv(B, tm) < 2:
        tm = max(chunk, pl.cdiv(pl.cdiv(B, 2), chunk) * chunk)
    return tm, chunk, pl.cdiv(B, tm)


def strengthnet_forward(x, prepared, *, tm=1024, chunk=256):
    """x: (B, input_dim) float32. `prepared`: output of prepare_params()."""
    B, in_dim = x.shape
    hid = prepared["w1"].shape[1]
    out_dim = prepared["w3"].shape[1]

    tm, chunk, grid_m = _choose_tiles(B, tm, chunk)

    # Triple-buffer the streaming x/out DMAs once the grid is deep enough to benefit.
    if grid_m >= 3:
        x_spec = pl.BlockSpec((tm, in_dim), lambda i: (i, 0),
                              pipeline_mode=pl.Buffered(3))
        o_spec = pl.BlockSpec((tm, out_dim), lambda i: (i, 0),
                              pipeline_mode=pl.Buffered(3))
    else:
        x_spec = pl.BlockSpec((tm, in_dim), lambda i: (i, 0))
        o_spec = pl.BlockSpec((tm, out_dim), lambda i: (i, 0))

    out = pl.pallas_call(
        functools.partial(_strengthnet_kernel, chunk=chunk),
        out_shape=jax.ShapeDtypeStruct((B, out_dim), jnp.float32),
        grid_spec=pltpu.PrefetchScalarGridSpec(
            num_scalar_prefetch=0,
            grid=(grid_m,),
            in_specs=[
                x_spec,                                            # x tile over batch
                pl.BlockSpec((in_dim, hid), lambda i: (0, 0)),     # w1 (VMEM-resident)
                pl.BlockSpec((1, hid), lambda i: (0, 0)),          # b1
                pl.BlockSpec((hid, hid), lambda i: (0, 0)),        # w2
                pl.BlockSpec((1, hid), lambda i: (0, 0)),          # b2
                pl.BlockSpec((hid, out_dim), lambda i: (0, 0)),    # w3 (no lane padding)
                pl.BlockSpec((1, out_dim), lambda i: (0, 0)),      # b3
            ],
            out_specs=o_spec,
        ),
        compiler_params=pltpu.CompilerParams(
            # Batch axis is embarrassingly parallel -> sharded across TCs on v7x.
            dimension_semantics=("parallel",),
        ),
    )(x, prepared["w1"], prepared["b1"], prepared["w2"], prepared["b2"],
      prepared["w3"], prepared["b3"])
    return out


def init_params(key, input_dim, output_dim, hidden=64):
    """Deterministic synthetic init matching nn.Linear shapes.
    PyTorch stores weight as (out, in); we store the transpose (in, out)."""
    ks = jax.random.split(key, 6)

    def lin(kw, kb, fan_in, fan_out):
        bound = 1.0 / jnp.sqrt(fan_in)
        w = jax.random.uniform(kw, (fan_in, fan_out), jnp.float32, -bound, bound)
        b = jax.random.uniform(kb, (1, fan_out), jnp.float32, -bound, bound)
        return w, b

    w1, b1 = lin(ks[0], ks[1], input_dim, hidden)
    w2, b2 = lin(ks[2], ks[3], hidden, hidden)
    w3, b3 = lin(ks[4], ks[5], hidden, output_dim)
    return {"w1": w1, "b1": b1, "w2": w2, "b2": b2, "w3": w3, "b3": b3}


def _reference_forward_f32(x, p):
    h1 = jnp.maximum(x @ p["w1"] + p["b1"], 0.0)
    h2 = jnp.maximum(h1 @ p["w2"] + p["b2"], 0.0)
    return h2 @ p["w3"] + p["b3"]


def _reference_forward_mixed(x, p, dtype):
    # Mirrors the kernel's bf16-operand / f32-accumulate arithmetic exactly.
    h1 = jnp.dot(x.astype(dtype), p["w1"].astype(dtype),
                 preferred_element_type=jnp.float32) + p["b1"]
    h1 = jnp.maximum(h1, 0.0).astype(dtype)
    h2 = jnp.dot(h1, p["w2"].astype(dtype),
                 preferred_element_type=jnp.float32) + p["b2"]
    h2 = jnp.maximum(h2, 0.0).astype(dtype)
    return jnp.dot(h2, p["w3"].astype(dtype),
                   preferred_element_type=jnp.float32) + p["b3"]


if __name__ == "__main__":
    key = jax.random.PRNGKey(0)
    kx, kp, kx2, kx3 = jax.random.split(key, 4)

    input_dim, output_dim = 32, 4
    params = init_params(kp, input_dim, output_dim)
    prepared = prepare_params(params)  # hoisted one-time weight/bias conversion

    # --- Test 1: tiny batch, single ragged grid block (tm clamps down to chunk). ---
    batch = 8
    x = jax.random.normal(kx, (batch, input_dim), jnp.float32)
    out = jax.block_until_ready(strengthnet_forward(x, prepared))
    assert out.shape == (batch, output_dim)
    ref_mixed = _reference_forward_mixed(x, params, jnp.bfloat16)
    ref_f32 = _reference_forward_f32(x, params)
    assert jnp.allclose(out, ref_mixed, atol=1e-3, rtol=1e-3), "mismatch vs mixed ref"
    assert jnp.allclose(out, ref_f32, atol=5e-2, rtol=5e-2), "mismatch vs f32 ref"

    # --- Test 2: multi-step grid (>=3) -> exercises Buffered(3) path + ragged tail. ---
    batch2 = 700
    x2 = jax.random.normal(kx2, (batch2, input_dim), jnp.float32)
    out2 = jax.block_until_ready(strengthnet_forward(x2, prepared, tm=256, chunk=128))
    assert out2.shape == (batch2, output_dim)
    ref2 = _reference_forward_mixed(x2, params, jnp.bfloat16)
    assert jnp.allclose(out2, ref2, atol=1e-3, rtol=1e-3), "mismatch on ragged batch"

    # --- Test 3: medium batch -> tm auto-split so the grid has >= 2 steps (v7x). ---
    batch3 = 300
    x3 = jax.random.normal(kx3, (batch3, input_dim), jnp.float32)
    out3 = jax.block_until_ready(strengthnet_forward(x3, prepared))
    assert out3.shape == (batch3, output_dim)
    ref3 = _reference_forward_mixed(x3, params, jnp.bfloat16)
    assert jnp.allclose(out3, ref3, atol=1e-3, rtol=1e-3), "mismatch on split batch"

    print("KERNEL_OK")
</pallas_src>

<mosaic_0001>
module attributes {stable_mosaic.version = 11 : i64} {
  func.func @_strengthnet_kernel(%arg0: i32, %arg1: memref<256x32xf32, #tpu.memory_space<vmem>>, %arg2: memref<32x64xbf16, #tpu.memory_space<vmem>>, %arg3: memref<1x64xf32, #tpu.memory_space<vmem>>, %arg4: memref<64x64xbf16, #tpu.memory_space<vmem>>, %arg5: memref<1x64xf32, #tpu.memory_space<vmem>>, %arg6: memref<64x4xbf16, #tpu.memory_space<vmem>>, %arg7: memref<1x4xf32, #tpu.memory_space<vmem>>, %arg8: memref<256x4xf32, #tpu.memory_space<vmem>>) attributes {dimension_semantics = [#tpu.dimension_semantics<parallel>], iteration_bounds = array<i64: 1>, scalar_prefetch = 0 : i64, scratch_operands = 0 : i64, tpu.core_type = #tpu.core_type<tc>, window_params = [{transform_indices = @transform_0, window_bounds = array<i64: 256, 32>}, {pipeline_mode = #tpu.pipeline_mode<synchronous>, transform_indices = @transform_1, window_bounds = array<i64: 32, 64>}, {pipeline_mode = #tpu.pipeline_mode<synchronous>, transform_indices = @transform_2, window_bounds = array<i64: 1, 64>}, {pipeline_mode = #tpu.pipeline_mode<synchronous>, transform_indices = @transform_3, window_bounds = array<i64: 64, 64>}, {pipeline_mode = #tpu.pipeline_mode<synchronous>, transform_indices = @transform_4, window_bounds = array<i64: 1, 64>}, {pipeline_mode = #tpu.pipeline_mode<synchronous>, transform_indices = @transform_5, window_bounds = array<i64: 64, 4>}, {pipeline_mode = #tpu.pipeline_mode<synchronous>, transform_indices = @transform_6, window_bounds = array<i64: 1, 4>}, {transform_indices = @transform_7, window_bounds = array<i64: 256, 4>}]} {
    %c0 = arith.constant 0 : index
    %c0_0 = arith.constant 0 : index
    %0 = vector.load %arg2[%c0, %c0_0] : memref<32x64xbf16, #tpu.memory_space<vmem>>, vector<32x64xbf16>
    %c0_1 = arith.constant 0 : index
    %c0_2 = arith.constant 0 : index
    %1 = vector.load %arg3[%c0_1, %c0_2] : memref<1x64xf32, #tpu.memory_space<vmem>>, vector<1x64xf32>
    %c0_3 = arith.constant 0 : index
    %c0_4 = arith.constant 0 : index
    %2 = vector.load %arg4[%c0_3, %c0_4] : memref<64x64xbf16, #tpu.memory_space<vmem>>, vector<64x64xbf16>
    %c0_5 = arith.constant 0 : index
    %c0_6 = arith.constant 0 : index
    %3 = vector.load %arg5[%c0_5, %c0_6] : memref<1x64xf32, #tpu.memory_space<vmem>>, vector<1x64xf32>
    %c0_7 = arith.constant 0 : index
    %c0_8 = arith.constant 0 : index
    %4 = vector.load %arg6[%c0_7, %c0_8] : memref<64x4xbf16, #tpu.memory_space<vmem>>, vector<64x4xbf16>
    %c0_9 = arith.constant 0 : index
    %c0_10 = arith.constant 0 : index
    %5 = vector.load %arg7[%c0_9, %c0_10] : memref<1x4xf32, #tpu.memory_space<vmem>>, vector<1x4xf32>
    %c0_i32 = arith.constant 0 : i32
    %c256_i32 = arith.constant 256 : i32
    %6 = arith.muli %c0_i32, %c256_i32 : i32
    %7 = tpu.assume_multiple %6, 256 : i32
    %8 = arith.index_cast %7 : i32 to index
    %c0_11 = arith.constant 0 : index
    %9 = vector.load %arg1[%8, %c0_11] : memref<256x32xf32, #tpu.memory_space<vmem>>, vector<256x32xf32>
    %10 = arith.truncf %9 : vector<256x32xf32> to vector<256x32xbf16>
    %cst = arith.constant dense<0.000000e+00> : vector<256x64xf32>
    %11 = tpu.matmul %10, %0, %cst {dimension_numbers = #tpu.dot_dimension_numbers<[1], [0], [0], [1], [0, 0, 1, 1], [], []>} : vector<256x32xbf16>, vector<32x64xbf16>, vector<256x64xf32> -> vector<256x64xf32>
    %12 = vector.broadcast %1 : vector<1x64xf32> to vector<256x64xf32>
    %13 = arith.addf %11, %12 : vector<256x64xf32>
    %cst_12 = arith.constant 0.000000e+00 : f32
    %14 = vector.broadcast %cst_12 : f32 to vector<256x64xf32>
    %15 = arith.maximumf %13, %14 : vector<256x64xf32>
    %16 = arith.truncf %15 : vector<256x64xf32> to vector<256x64xbf16>
    %cst_13 = arith.constant dense<0.000000e+00> : vector<256x64xf32>
    %17 = tpu.matmul %16, %2, %cst_13 {dimension_numbers = #tpu.dot_dimension_numbers<[1], [0], [0], [1], [0, 0, 1, 1], [], []>} : vector<256x64xbf16>, vector<64x64xbf16>, vector<256x64xf32> -> vector<256x64xf32>
    %18 = vector.broadcast %3 : vector<1x64xf32> to vector<256x64xf32>
    %19 = arith.addf %17, %18 : vector<256x64xf32>
    %cst_14 = arith.constant 0.000000e+00 : f32
    %20 = vector.broadcast %cst_14 : f32 to vector<256x64xf32>
    %21 = arith.maximumf %19, %20 : vector<256x64xf32>
    %22 = arith.truncf %21 : vector<256x64xf32> to vector<256x64xbf16>
    %cst_15 = arith.constant dense<0.000000e+00> : vector<256x4xf32>
    %23 = tpu.matmul %22, %4, %cst_15 {dimension_numbers = #tpu.dot_dimension_numbers<[1], [0], [0], [1], [0, 0, 1, 1], [], []>} : vector<256x64xbf16>, vector<64x4xbf16>, vector<256x4xf32> -> vector<256x4xf32>
    %24 = vector.broadcast %5 : vector<1x4xf32> to vector<256x4xf32>
    %25 = arith.addf %23, %24 : vector<256x4xf32>
    %26 = arith.index_cast %7 : i32 to index
    %c0_16 = arith.constant 0 : index
    %27 = vector.load %arg8[%26, %c0_16] : memref<256x4xf32, #tpu.memory_space<vmem>>, vector<256x4xf32>
    tpu.vector_store %arg8[%26, %c0_16], %25 {strides = array<i32>} : memref<256x4xf32, #tpu.memory_space<vmem>>, vector<256x4xf32>,
    %c1_i32 = arith.constant 1 : i32
    return
  }
  func.func @transform_0(%arg0: i32) -> (i32, i32) {
    %c0_i32 = arith.constant 0 : i32
    %c0_i32_0 = arith.constant 0 : i32
    return %arg0, %c0_i32 : i32, i32
  }
  func.func @transform_1(%arg0: i32) -> (i32, i32) {
    %c0_i32 = arith.constant 0 : i32
    %c0_i32_0 = arith.constant 0 : i32
    %c0_i32_1 = arith.constant 0 : i32
    return %c0_i32, %c0_i32_0 : i32, i32
  }
  func.func @transform_2(%arg0: i32) -> (i32, i32) {
    %c0_i32 = arith.constant 0 : i32
    %c0_i32_0 = arith.constant 0 : i32
    %c0_i32_1 = arith.constant 0 : i32
    return %c0_i32, %c0_i32_0 : i32, i32
  }
  func.func @transform_3(%arg0: i32) -> (i32, i32) {
    %c0_i32 = arith.constant 0 : i32
    %c0_i32_0 = arith.constant 0 : i32
    %c0_i32_1 = arith.constant 0 : i32
    return %c0_i32, %c0_i32_0 : i32, i32
  }
  func.func @transform_4(%arg0: i32) -> (i32, i32) {
    %c0_i32 = arith.constant 0 : i32
    %c0_i32_0 = arith.constant 0 : i32
    %c0_i32_1 = arith.constant 0 : i32
    return %c0_i32, %c0_i32_0 : i32, i32
  }
  func.func @transform_5(%arg0: i32) -> (i32, i32) {
    %c0_i32 = arith.constant 0 : i32
    %c0_i32_0 = arith.constant 0 : i32
    %c0_i32_1 = arith.constant 0 : i32
    return %c0_i32, %c0_i32_0 : i32, i32
  }
  func.func @transform_6(%arg0: i32) -> (i32, i32) {
    %c0_i32 = arith.constant 0 : i32
    %c0_i32_0 = arith.constant 0 : i32
    %c0_i32_1 = arith.constant 0 : i32
    return %c0_i32, %c0_i32_0 : i32, i32
  }
  func.func @transform_7(%arg0: i32) -> (i32, i32) {
    %c0_i32 = arith.constant 0 : i32
    %c0_i32_0 = arith.constant 0 : i32
    return %arg0, %c0_i32 : i32, i32
  }
}

</mosaic_0001>

<llo_original>
// kernel: tpu_custom_call.1
$region0: #{tpu_custom_call.1}
  #allocation0 [shape = 'u32[]', space=smem, size = 0x4, offset = 0x4, fixed_abs, tag = 'smem constant byte address 0x4 - core index']
  #allocation1 [shape = 'u32[144,128]{1,0:T(1,128)}', space=vmem, size = 0x12000, scoped, tag = 'internal scratch']
  %s0 = inlined_call_operand.vmem [shape: f32[8,32], index: 0, kind: input, shape index: {}]
  %s1 = inlined_call_operand.hbm [shape: bf16[32,64], index: 1, kind: input, shape index: {}]
  %s2 = inlined_call_operand.vmem [shape: f32[1,64], index: 2, kind: input, shape index: {}]
  %s3 = inlined_call_operand.vmem [shape: bf16[64,64], index: 3, kind: input, shape index: {}]
  %s4 = inlined_call_operand.vmem [shape: f32[1,64], index: 4, kind: input, shape index: {}]
  %s5 = inlined_call_operand.vmem [shape: bf16[64,4], index: 5, kind: input, shape index: {}]
  %s6 = inlined_call_operand.vmem [shape: f32[1,4], index: 6, kind: input, shape index: {}]
  %s7 = inlined_call_operand.vmem [shape: f32[8,4], index: 7, kind: output, shape index: {}]
  %s8 = sld [smem:[#allocation0]]
  $region76: #{tpu_custom_call.1} parent=0
    _
  %s10 = ssub.s32 1, %s8
  %s11 = scalar_select 0, %s10, %s8
  $region1: #{tpu_custom_call.1} parent=0
    #allocation2 [shape = 'u8[8192]{0}', space=vmem, size = 0x2000, scoped, tag = 'input window, operand 1, single buffered']
    #allocation3 [shape = 's32[1]{0}', space=sflag, size = 0x4, scoped, tag = 'scoped memory for tpu_custom_call.1']
    #allocation4 [shape = 'u8[131072]{0}', space=vmem, size = 0x20000, scoped, tag = 'output window, operand 0, single buffered']
    %12 = vsyncpa [#allocation3], 0
    // Predicated region
    $region2: #{tpu_custom_call.1} parent=1 // pred_check
      _
    $region3: #{tpu_custom_call.1} parent=1 // pred_check_branch
      %14 = sbr.rel (0) target = $region5
    $region4: #{tpu_custom_call.1} parent=1 // pred_region
      _
    $region5: #{tpu_custom_call.1} parent=1 // pred_fallthru
      _
    // Predicated region
    $region6: #{tpu_custom_call.1} parent=1 // pred_check
      _
    $region7: #{tpu_custom_call.1} parent=1 // pred_check_branch
      %16 = sbr.rel (0) target = $region9
    $region8: #{tpu_custom_call.1} parent=1 // pred_region
      %s18 = ssub.s32 256, 256
      %19 = vsyncadd [#allocation3], %s18
      %s20 = sshll.u32 [#allocation2], 4
      %s21 = int_to_ptr.vmem [resolvable:$true] %s20
      %26 = dma.hbm_to_vmem [thread:$0]  %s1, 256, %s21, [#allocation3], 64, 64, 4
    $region9: #{tpu_custom_call.1} parent=1 // pred_fallthru
      _
    // Predicated region
    $region10: #{tpu_custom_call.1} parent=1 // pred_check
      _
    $region11: #{tpu_custom_call.1} parent=1 // pred_check_branch
      %28 = sbr.rel (0) target = $region13
    $region12: #{tpu_custom_call.1} parent=1 // pred_region
      _
    $region13: #{tpu_custom_call.1} parent=1 // pred_fallthru
      _
    // Predicated region
    $region14: #{tpu_custom_call.1} parent=1 // pred_check
      _
    $region15: #{tpu_custom_call.1} parent=1 // pred_check_branch
      %30 = sbr.rel (0) target = $region17
    $region16: #{tpu_custom_call.1} parent=1 // pred_region
      _
    $region17: #{tpu_custom_call.1} parent=1 // pred_fallthru
      _
    // Predicated region
    $region18: #{tpu_custom_call.1} parent=1 // pred_check
      _
    $region19: #{tpu_custom_call.1} parent=1 // pred_check_branch
      %32 = sbr.rel (0) target = $region21
    $region20: #{tpu_custom_call.1} parent=1 // pred_region
      _
    $region21: #{tpu_custom_call.1} parent=1 // pred_fallthru
      _
    // Predicated region
    $region22: #{tpu_custom_call.1} parent=1 // pred_check
      _
    $region23: #{tpu_custom_call.1} parent=1 // pred_check_branch
      %34 = sbr.rel (0) target = $region25
    $region24: #{tpu_custom_call.1} parent=1 // pred_region
      _
    $region25: #{tpu_custom_call.1} parent=1 // pred_fallthru
      _
    // Predicated region
    $region26: #{tpu_custom_call.1} parent=1 // pred_check
      _
    $region27: #{tpu_custom_call.1} parent=1 // pred_check_branch
      %36 = sbr.rel (0) target = $region29
    $region28: #{tpu_custom_call.1} parent=1 // pred_region
      _
    $region29: #{tpu_custom_call.1} parent=1 // pred_fallthru
      _
    // Predicated region
    $region30: #{tpu_custom_call.1} parent=1 // pred_check
      _
    $region31: #{tpu_custom_call.1} parent=1 // pred_check_branch
      %38 = sbr.rel (0) target = $region33
    $region32: #{tpu_custom_call.1} parent=1 // pred_region
      %39 = dma.done [#allocation3], 256
    $region33: #{tpu_custom_call.1} parent=1 // pred_fallthru
      _
    %v41 = vld [vmem:[#allocation2] sm:$0xf]
    %v42 = vld [vmem:[#allocation2 + $0x4] sm:$0xf]
    %v43 = vld [vmem:[#allocation2 + $0x8] sm:$0xf]
    %v44 = vld [vmem:[#allocation2 + $0xc] sm:$0xf]
    %v45 = vld [vmem:[%s2] sm:$0x1]
    %v46 = vld [vmem:[%s3] sm:$0xf]
    %v47 = vld [vmem:[%s3 + $0x4] sm:$0xf]
    %v48 = vld [vmem:[%s3 + $0x8] sm:$0xf]
    %v49 = vld [vmem:[%s3 + $0xc] sm:$0xf]
    %v50 = vld [vmem:[%s3 + $0x10] sm:$0xf]
    %v51 = vld [vmem:[%s3 + $0x14] sm:$0xf]
    %v52 = vld [vmem:[%s3 + $0x18] sm:$0xf]
    %v53 = vld [vmem:[%s3 + $0x1c] sm:$0xf]
    %v54 = vld [vmem:[%s4] sm:$0x1]
    %v55 = vld [vmem:[%s5] sm:$0xf]
    %v56 = vld [vmem:[%s5 + $0x4] sm:$0xf]
    %v57 = vld [vmem:[%s5 + $0x8] sm:$0xf]
    %v58 = vld [vmem:[%s5 + $0xc] sm:$0xf]
    %v59 = vld [vmem:[%s5 + $0x10] sm:$0xf]
    %v60 = vld [vmem:[%s5 + $0x14] sm:$0xf]
    %v61 = vld [vmem:[%s5 + $0x18] sm:$0xf]
    %v62 = vld [vmem:[%s5 + $0x1c] sm:$0xf]
    %v63 = vld [vmem:[%s6] sm:$0x1]
    %v64 = vld [vmem:[%s0] sm:$0xff]
    %v65 = vld [vmem:[%s0 + $0x8] sm:$0xff]
    %v66 = vld [vmem:[%s0 + $0x10] sm:$0xff]
    %v67 = vld [vmem:[%s0 + $0x18] sm:$0xff]
    %v68 = vld [vmem:[%s0 + $0x20] sm:$0xff]
    %v69 = vld [vmem:[%s0 + $0x28] sm:$0xff]
    %v70 = vld [vmem:[%s0 + $0x30] sm:$0xff]
    %v71 = vld [vmem:[%s0 + $0x38] sm:$0xff]
    %v72 = vld [vmem:[%s0 + $0x40] sm:$0xff]
    %v73 = vld [vmem:[%s0 + $0x48] sm:$0xff]
    %v74 = vld [vmem:[%s0 + $0x50] sm:$0xff]
    %v75 = vld [vmem:[%s0 + $0x58] sm:$0xff]
    %v76 = vld [vmem:[%s0 + $0x60] sm:$0xff]
    %v77 = vld [vmem:[%s0 + $0x68] sm:$0xff]
    %v78 = vld [vmem:[%s0 + $0x70] sm:$0xff]
    %v79 = vld [vmem:[%s0 + $0x78] sm:$0xff]
    %v80 = vld [vmem:[%s0 + $0x80] sm:$0xff]
    %v81 = vld [vmem:[%s0 + $0x88] sm:$0xff]
    %v82 = vld [vmem:[%s0 + $0x90] sm:$0xff]
    %v83 = vld [vmem:[%s0 + $0x98] sm:$0xff]
    %v84 = vld [vmem:[%s0 + $0xa0] sm:$0xff]
    %v85 = vld [vmem:[%s0 + $0xa8] sm:$0xff]
    %v86 = vld [vmem:[%s0 + $0xb0] sm:$0xff]
    %v87 = vld [vmem:[%s0 + $0xb8] sm:$0xff]
    %v88 = vld [vmem:[%s0 + $0xc0] sm:$0xff]
    %v89 = vld [vmem:[%s0 + $0xc8] sm:$0xff]
    %v90 = vld [vmem:[%s0 + $0xd0] sm:$0xff]
    %v91 = vld [vmem:[%s0 + $0xd8] sm:$0xff]
    %v92 = vld [vmem:[%s0 + $0xe0] sm:$0xff]
    %v93 = vld [vmem:[%s0 + $0xe8] sm:$0xff]
    %v94 = vld [vmem:[%s0 + $0xf0] sm:$0xff]
    %v95 = vld [vmem:[%s0 + $0xf8] sm:$0xff]
    %v96 = vpack.c.bf16 %v65, %v64
    %v97 = vpack.c.bf16 %v67, %v66
    %v98 = vpack.c.bf16 %v69, %v68
    %v99 = vpack.c.bf16 %v71, %v70
    %v100 = vpack.c.bf16 %v73, %v72
    %v101 = vpack.c.bf16 %v75, %v74
    %v102 = vpack.c.bf16 %v77, %v76
    %v103 = vpack.c.bf16 %v79, %v78
    %v104 = vpack.c.bf16 %v81, %v80
    %v105 = vpack.c.bf16 %v83, %v82
    %v106 = vpack.c.bf16 %v85, %v84
    %v107 = vpack.c.bf16 %v87, %v86
    %v108 = vpack.c.bf16 %v89, %v88
    %v109 = vpack.c.bf16 %v91, %v90
    %v110 = vpack.c.bf16 %v93, %v92
    %v111 = vpack.c.bf16 %v95, %v94
    %v113 = vlaneseq
    %v114 = vshrl.u32 %v113, 7
    %v115 = vsub.s32 0, %v114
    %v116 = vrot.slane %v45, %v115
    %v122 = vunpack.c.l.b16 %v41
    %v123 = vunpack.c.l.b16 %v42
    %v124 = vunpack.c.l.b16 %v43
    %v125 = vunpack.c.l.b16 %v44
    %v126 = vpack.c.b16 %v123, %v122
    %v127 = vpack.c.b16 %v125, %v124
    %vm130 = vcmask 261120
    %v132 = vsel %vm130, %v96, 0
    %v135 = vsel %vm130, %v97, 0
    %v138 = vsel %vm130, %v98, 0
    %v141 = vsel %vm130, %v99, 0
    %v144 = vsel %vm130, %v100, 0
    %v147 = vsel %vm130, %v101, 0
    %v150 = vsel %vm130, %v102, 0
    %v153 = vsel %vm130, %v103, 0
    %v156 = vsel %vm130, %v104, 0
    %v159 = vsel %vm130, %v105, 0
    %v162 = vsel %vm130, %v106, 0
    %v165 = vsel %vm130, %v107, 0
    %v168 = vsel %vm130, %v108, 0
    %v171 = vsel %vm130, %v109, 0
    %v174 = vsel %vm130, %v110, 0
    %v177 = vsel %vm130, %v111, 0
    %179 = vmatprep.subr.bf16.mxu0 0
    %180 = vmatpush1.bf16.msra.mxu0 %v126
    %181 = vmatprep.subr.bf16.mxu0 0
    %182 = vmatpush1.bf16.msra.mxu0 %v127
    %183 = vmatprep.subr.bf16.mxu0 0
    %184 = vmatpush1.bf16.msra.mxu0 0
    %185 = vmatprep.subr.bf16.mxu0 0
    %186 = vmatpush1.bf16.msra.mxu0 0
    %187 = vmatprep.subr.bf16.mxu0 0
    %188 = vmatpush1.bf16.msra.mxu0 0
    %189 = vmatprep.subr.bf16.mxu0 0
    %190 = vmatpush1.bf16.msra.mxu0 0
    %191 = vmatprep.subr.bf16.mxu0 0
    %192 = vmatpush1.bf16.msra.mxu0 0
    %193 = vmatprep.subr.bf16.mxu0 0
    %194 = vmatpush1.bf16.msra.mxu0 0
    %195 = vmatprep.subr.bf16.mxu0 0
    %196 = vmatpush1.bf16.msra.mxu0 0
    %197 = vmatprep.subr.bf16.mxu0 0
    %198 = vmatpush1.bf16.msra.mxu0 0
    %199 = vmatprep.subr.bf16.mxu0 0
    %200 = vmatpush1.bf16.msra.mxu0 0
    %201 = vmatprep.subr.bf16.mxu0 0
    %202 = vmatpush1.bf16.msra.mxu0 0
    %203 = vmatprep.subr.bf16.mxu0 0
    %204 = vmatpush1.bf16.msra.mxu0 0
    %205 = vmatprep.subr.bf16.mxu0 0
    %206 = vmatpush1.bf16.msra.mxu0 0
    %207 = vmatprep.subr.bf16.mxu0 0
    %208 = vmatpush1.bf16.msra.mxu0 0
    %209 = vmatprep.subr.bf16.mxu0 0
    %210 = vmatpush1.bf16.msra.mxu0 0
    %211 = vmatprep.mubr.bf16.mxu0 0
    %212 = vmatmul.mubr.bf16.gmra.mrb[0].mxu0 %v132
    %v213 = vpop.f32.mrb[0].mxu0
    %v214 = vadd.f32 %v116, %v213
    %v215 = vpop.f32.mrb[0].mxu0
    %v216 = vpop.f32.mrb[0].mxu0
    %v217 = vadd.f32 %v116, %v216
    %v218 = vpop.f32.mrb[0].mxu0
    %219 = vmatprep.mubr.bf16.mxu0 0
    %220 = vmatmul.mubr.bf16.gmra.mrb[0].mxu0 %v135
    %v221 = vpop.f32.mrb[0].mxu0
    %v222 = vadd.f32 %v116, %v221
    %v223 = vpop.f32.mrb[0].mxu0
    %v224 = vpop.f32.mrb[0].mxu0
    %v225 = vadd.f32 %v116, %v224
    %v226 = vpop.f32.mrb[0].mxu0
    %227 = vmatprep.mubr.bf16.mxu0 0
    %228 = vmatmul.mubr.bf16.gmra.mrb[0].mxu0 %v138
    %v229 = vpop.f32.mrb[0].mxu0
    %v230 = vadd.f32 %v116, %v229
    %v231 = vpop.f32.mrb[0].mxu0
    %v232 = vpop.f32.mrb[0].mxu0
    %v233 = vadd.f32 %v116, %v232
    %v234 = vpop.f32.mrb[0].mxu0
    %235 = vmatprep.mubr.bf16.mxu0 0
    %236 = vmatmul.mubr.bf16.gmra.mrb[0].mxu0 %v141
    %v237 = vpop.f32.mrb[0].mxu0
    %v238 = vadd.f32 %v116, %v237
    %v239 = vpop.f32.mrb[0].mxu0
    %v240 = vpop.f32.mrb[0].mxu0
    %v241 = vadd.f32 %v116, %v240
    %v242 = vpop.f32.mrb[0].mxu0
    %243 = vmatprep.mubr.bf16.mxu0 0
    %244 = vmatmul.mubr.bf16.gmra.mrb[0].mxu0 %v144
    %v245 = vpop.f32.mrb[0].mxu0
    %v246 = vadd.f32 %v116, %v245
    %v247 = vpop.f32.mrb[0].mxu0
    %v248 = vpop.f32.mrb[0].mxu0
    %v249 = vadd.f32 %v116, %v248
    %v250 = vpop.f32.mrb[0].mxu0
    %251 = vmatprep.mubr.bf16.mxu0 0
    %252 = vmatmul.mubr.bf16.gmra.mrb[0].mxu0 %v147
    %v253 = vpop.f32.mrb[0].mxu0
    %v254 = vadd.f32 %v116, %v253
    %v255 = vpop.f32.mrb[0].mxu0
    %v256 = vpop.f32.mrb[0].mxu0
    %v257 = vadd.f32 %v116, %v256
    %v258 = vpop.f32.mrb[0].mxu0
    %259 = vmatprep.mubr.bf16.mxu0 0
    %260 = vmatmul.mubr.bf16.gmra.mrb[0].mxu0 %v150
    %v261 = vpop.f32.mrb[0].mxu0
    %v262 = vadd.f32 %v116, %v261
    %v263 = vpop.f32.mrb[0].mxu0
    %v264 = vpop.f32.mrb[0].mxu0
    %v265 = vadd.f32 %v116, %v264
    %v266 = vpop.f32.mrb[0].mxu0
    %267 = vmatprep.mubr.bf16.mxu0 0
    %268 = vmatmul.mubr.bf16.gmra.mrb[0].mxu0 %v153
    %v269 = vpop.f32.mrb[0].mxu0
    %v270 = vadd.f32 %v116, %v269
    %v271 = vpop.f32.mrb[0].mxu0
    %v272 = vpop.f32.mrb[0].mxu0
    %v273 = vadd.f32 %v116, %v272
    %v274 = vpop.f32.mrb[0].mxu0
    %275 = vmatprep.mubr.bf16.mxu0 0
    %276 = vmatmul.mubr.bf16.gmra.mrb[0].mxu0 %v156
    %v277 = vpop.f32.mrb[0].mxu0
    %v278 = vadd.f32 %v116, %v277
    %v279 = vpop.f32.mrb[0].mxu0
    %v280 = vpop.f32.mrb[0].mxu0
    %v281 = vadd.f32 %v116, %v280
    %v282 = vpop.f32.mrb[0].mxu0
    %283 = vmatprep.mubr.bf16.mxu0 0
    %284 = vmatmul.mubr.bf16.gmra.mrb[0].mxu0 %v159
    %v285 = vpop.f32.mrb[0].mxu0
    %v286 = vadd.f32 %v116, %v285
    %v287 = vpop.f32.mrb[0].mxu0
    %v288 = vpop.f32.mrb[0].mxu0
    %v289 = vadd.f32 %v116, %v288
    %v290 = vpop.f32.mrb[0].mxu0
    %291 = vmatprep.mubr.bf16.mxu0 0
    %292 = vmatmul.mubr.bf16.gmra.mrb[0].mxu0 %v162
    %v293 = vpop.f32.mrb[0].mxu0
    %v294 = vadd.f32 %v116, %v293
    %v295 = vpop.f32.mrb[0].mxu0
    %v296 = vpop.f32.mrb[0].mxu0
    %v297 = vadd.f32 %v116, %v296
    %v298 = vpop.f32.mrb[0].mxu0
    %299 = vmatprep.mubr.bf16.mxu0 0
    %300 = vmatmul.mubr.bf16.gmra.mrb[0].mxu0 %v165
    %v301 = vpop.f32.mrb[0].mxu0
    %v302 = vadd.f32 %v116, %v301
    %v303 = vpop.f32.mrb[0].mxu0
    %v304 = vpop.f32.mrb[0].mxu0
    %v305 = vadd.f32 %v116, %v304
    %v306 = vpop.f32.mrb[0].mxu0
    %307 = vmatprep.mubr.bf16.mxu0 0
    %308 = vmatmul.mubr.bf16.gmra.mrb[0].mxu0 %v168
    %v309 = vpop.f32.mrb[0].mxu0
    %v310 = vadd.f32 %v116, %v309
    %v311 = vpop.f32.mrb[0].mxu0
    %v312 = vpop.f32.mrb[0].mxu0
    %v313 = vadd.f32 %v116, %v312
    %v314 = vpop.f32.mrb[0].mxu0
    %315 = vmatprep.mubr.bf16.mxu0 0
    %316 = vmatmul.mubr.bf16.gmra.mrb[0].mxu0 %v171
    %v317 = vpop.f32.mrb[0].mxu0
    %v318 = vadd.f32 %v116, %v317
    %v319 = vpop.f32.mrb[0].mxu0
    %v320 = vpop.f32.mrb[0].mxu0
    %v321 = vadd.f32 %v116, %v320
    %v322 = vpop.f32.mrb[0].mxu0
    %323 = vmatprep.mubr.bf16.mxu0 0
    %324 = vmatmul.mubr.bf16.gmra.mrb[0].mxu0 %v174
    %v325 = vpop.f32.mrb[0].mxu0
    %v326 = vadd.f32 %v116, %v325
    %v327 = vpop.f32.mrb[0].mxu0
    %v328 = vpop.f32.mrb[0].mxu0
    %v329 = vadd.f32 %v116, %v328
    %v330 = vpop.f32.mrb[0].mxu0
    %331 = vmatprep.mubr.bf16.mxu0 0
    %332 = vmatmul.mubr.bf16.gmra.mrb[0].mxu0 %v177
    %v333 = vpop.f32.mrb[0].mxu0
    %v334 = vadd.f32 %v116, %v333
    %v335 = vpop.f32.mrb[0].mxu0
    %v336 = vpop.f32.mrb[0].mxu0
    %v337 = vadd.f32 %v116, %v336
    %v338 = vpop.f32.mrb[0].mxu0
    %339 = vdwg.mxu0
    %v340 = vmax.f32 %v214, 0.0
    %v341 = vmax.f32 %v217, 0.0
    %v342 = vmax.f32 %v222, 0.0
    %v343 = vmax.f32 %v225, 0.0
    %v344 = vmax.f32 %v230, 0.0
    %v345 = vmax.f32 %v233, 0.0
    %v346 = vmax.f32 %v238, 0.0
    %v347 = vmax.f32 %v241, 0.0
    %v348 = vmax.f32 %v246, 0.0
    %v349 = vmax.f32 %v249, 0.0
    %v350 = vmax.f32 %v254, 0.0
    %v351 = vmax.f32 %v257, 0.0
    %v352 = vmax.f32 %v262, 0.0
    %v353 = vmax.f32 %v265, 0.0
    %v354 = vmax.f32 %v270, 0.0
    %v355 = vmax.f32 %v273, 0.0
    %v356 = vmax.f32 %v278, 0.0
    %v357 = vmax.f32 %v281, 0.0
    %v358 = vmax.f32 %v286, 0.0
    %v359 = vmax.f32 %v289, 0.0
    %v360 = vmax.f32 %v294, 0.0
    %v361 = vmax.f32 %v297, 0.0
    %v362 = vmax.f32 %v302, 0.0
    %v363 = vmax.f32 %v305, 0.0
    %v364 = vmax.f32 %v310, 0.0
    %v365 = vmax.f32 %v313, 0.0
    %v366 = vmax.f32 %v318, 0.0
    %v367 = vmax.f32 %v321, 0.0
    %v368 = vmax.f32 %v326, 0.0
    %v369 = vmax.f32 %v329, 0.0
    %v370 = vmax.f32 %v334, 0.0
    %v371 = vmax.f32 %v337, 0.0
    %v372 = vpack.c.bf16 %v341, %v340
    %v373 = vpack.c.bf16 %v343, %v342
    %v374 = vpack.c.bf16 %v345, %v344
    %v375 = vpack.c.bf16 %v347, %v346
    %v376 = vpack.c.bf16 %v349, %v348
    %v377 = vpack.c.bf16 %v351, %v350
    %v378 = vpack.c.bf16 %v353, %v352
    %v379 = vpack.c.bf16 %v355, %v354
    %v380 = vpack.c.bf16 %v357, %v356
    %v381 = vpack.c.bf16 %v359, %v358
    %v382 = vpack.c.bf16 %v361, %v360
    %v383 = vpack.c.bf16 %v363, %v362
    %v384 = vpack.c.bf16 %v365, %v364
    %v385 = vpack.c.bf16 %v367, %v366
    %v386 = vpack.c.bf16 %v369, %v368
    %v387 = vpack.c.bf16 %v371, %v370
    %v389 = vlaneseq
    %v390 = vshrl.u32 %v389, 7
    %v391 = vsub.s32 0, %v390
    %v392 = vrot.slane %v54, %v391
    %v402 = vunpack.c.l.b16 %v46
    %v403 = vunpack.c.l.b16 %v47
    %v404 = vunpack.c.l.b16 %v48
    %v405 = vunpack.c.l.b16 %v49
    %v406 = vunpack.c.l.b16 %v50
    %v407 = vunpack.c.l.b16 %v51
    %v408 = vunpack.c.l.b16 %v52
    %v409 = vunpack.c.l.b16 %v53
    %v410 = vpack.c.b16 %v403, %v402
    %v411 = vpack.c.b16 %v405, %v404
    %v412 = vpack.c.b16 %v407, %v406
    %v413 = vpack.c.b16 %v409, %v408
    %vm418 = vcmask 523264
    %v420 = vsel %vm418, %v372, 0
    %v423 = vsel %vm418, %v373, 0
    %v426 = vsel %vm418, %v374, 0
    %v429 = vsel %vm418, %v375, 0
    %v432 = vsel %vm418, %v376, 0
    %v435 = vsel %vm418, %v377, 0
    %v438 = vsel %vm418, %v378, 0
    %v441 = vsel %vm418, %v379, 0
    %v444 = vsel %vm418, %v380, 0
    %v447 = vsel %vm418, %v381, 0
    %v450 = vsel %vm418, %v382, 0
    %v453 = vsel %vm418, %v383, 0
    %v456 = vsel %vm418, %v384, 0
    %v459 = vsel %vm418, %v385, 0
    %v462 = vsel %vm418, %v386, 0
    %v465 = vsel %vm418, %v387, 0
    %467 = vmatprep.subr.bf16.mxu0 0
    %468 = vmatpush1.bf16.msra.mxu0 %v410
    %469 = vmatprep.subr.bf16.mxu0 0
    %470 = vmatpush1.bf16.msra.mxu0 %v411
    %471 = vmatprep.subr.bf16.mxu0 0
    %472 = vmatpush1.bf16.msra.mxu0 %v412
    %473 = vmatprep.subr.bf16.mxu0 0
    %474 = vmatpush1.bf16.msra.mxu0 %v413
    %475 = vmatprep.subr.bf16.mxu0 0
    %476 = vmatpush1.bf16.msra.mxu0 0
    %477 = vmatprep.subr.bf16.mxu0 0
    %478 = vmatpush1.bf16.msra.mxu0 0
    %479 = vmatprep.subr.bf16.mxu0 0
    %480 = vmatpush1.bf16.msra.mxu0 0
    %481 = vmatprep.subr.bf16.mxu0 0
    %482 = vmatpush1.bf16.msra.mxu0 0
    %483 = vmatprep.subr.bf16.mxu0 0
    %484 = vmatpush1.bf16.msra.mxu0 0
    %485 = vmatprep.subr.bf16.mxu0 0
    %486 = vmatpush1.bf16.msra.mxu0 0
    %487 = vmatprep.subr.bf16.mxu0 0
    %488 = vmatpush1.bf16.msra.mxu0 0
    %489 = vmatprep.subr.bf16.mxu0 0
    %490 = vmatpush1.bf16.msra.mxu0 0
    %491 = vmatprep.subr.bf16.mxu0 0
    %492 = vmatpush1.bf16.msra.mxu0 0
    %493 = vmatprep.subr.bf16.mxu0 0
    %494 = vmatpush1.bf16.msra.mxu0 0
    %495 = vmatprep.subr.bf16.mxu0 0
    %496 = vmatpush1.bf16.msra.mxu0 0
    %497 = vmatprep.subr.bf16.mxu0 0
    %498 = vmatpush1.bf16.msra.mxu0 0
    %499 = vmatprep.mubr.bf16.mxu0 0
    %500 = vmatmul.mubr.bf16.gmra.mrb[0].mxu0 %v420
    %v501 = vpop.f32.mrb[0].mxu0
    %v502 = vadd.f32 %v392, %v501
    %v503 = vpop.f32.mrb[0].mxu0
    %v504 = vpop.f32.mrb[0].mxu0
    %v505 = vadd.f32 %v392, %v504
    %v506 = vpop.f32.mrb[0].mxu0
    %507 = vmatprep.mubr.bf16.mxu0 0
    %508 = vmatmul.mubr.bf16.gmra.mrb[0].mxu0 %v423
    %v509 = vpop.f32.mrb[0].mxu0
    %v510 = vadd.f32 %v392, %v509
    %v511 = vpop.f32.mrb[0].mxu0
    %v512 = vpop.f32.mrb[0].mxu0
    %v513 = vadd.f32 %v392, %v512
    %v514 = vpop.f32.mrb[0].mxu0
    %515 = vmatprep.mubr.bf16.mxu0 0
    %516 = vmatmul.mubr.bf16.gmra.mrb[0].mxu0 %v426
    %v517 = vpop.f32.mrb[0].mxu0
    %v518 = vadd.f32 %v392, %v517
    %v519 = vpop.f32.mrb[0].mxu0
    %v520 = vpop.f32.mrb[0].mxu0
    %v521 = vadd.f32 %v392, %v520
    %v522 = vpop.f32.mrb[0].mxu0
    %523 = vmatprep.mubr.bf16.mxu0 0
    %524 = vmatmul.mubr.bf16.gmra.mrb[0].mxu0 %v429
    %v525 = vpop.f32.mrb[0].mxu0
    %v526 = vadd.f32 %v392, %v525
    %v527 = vpop.f32.mrb[0].mxu0
    %v528 = vpop.f32.mrb[0].mxu0
    %v529 = vadd.f32 %v392, %v528
    %v530 = vpop.f32.mrb[0].mxu0
    %531 = vmatprep.mubr.bf16.mxu0 0
    %532 = vmatmul.mubr.bf16.gmra.mrb[0].mxu0 %v432
    %v533 = vpop.f32.mrb[0].mxu0
    %v534 = vadd.f32 %v392, %v533
    %v535 = vpop.f32.mrb[0].mxu0
    %v536 = vpop.f32.mrb[0].mxu0
    %v537 = vadd.f32 %v392, %v536
    %v538 = vpop.f32.mrb[0].mxu0
    %539 = vmatprep.mubr.bf16.mxu0 0
    %540 = vmatmul.mubr.bf16.gmra.mrb[0].mxu0 %v435
    %v541 = vpop.f32.mrb[0].mxu0
    %v542 = vadd.f32 %v392, %v541
    %v543 = vpop.f32.mrb[0].mxu0
    %v544 = vpop.f32.mrb[0].mxu0
    %v545 = vadd.f32 %v392, %v544
    %v546 = vpop.f32.mrb[0].mxu0
    %547 = vmatprep.mubr.bf16.mxu0 0
    %548 = vmatmul.mubr.bf16.gmra.mrb[0].mxu0 %v438
    %v549 = vpop.f32.mrb[0].mxu0
    %v550 = vadd.f32 %v392, %v549
    %v551 = vpop.f32.mrb[0].mxu0
    %v552 = vpop.f32.mrb[0].mxu0
    %v553 = vadd.f32 %v392, %v552
    %v554 = vpop.f32.mrb[0].mxu0
    %555 = vmatprep.mubr.bf16.mxu0 0
    %556 = vmatmul.mubr.bf16.gmra.mrb[0].mxu0 %v441
    %v557 = vpop.f32.mrb[0].mxu0
    %v558 = vadd.f32 %v392, %v557
    %v559 = vpop.f32.mrb[0].mxu0
    %v560 = vpop.f32.mrb[0].mxu0
    %v561 = vadd.f32 %v392, %v560
    %v562 = vpop.f32.mrb[0].mxu0
    %563 = vmatprep.mubr.bf16.mxu0 0
    %564 = vmatmul.mubr.bf16.gmra.mrb[0].mxu0 %v444
    %v565 = vpop.f32.mrb[0].mxu0
    %v566 = vadd.f32 %v392, %v565
    %v567 = vpop.f32.mrb[0].mxu0
    %v568 = vpop.f32.mrb[0].mxu0
    %v569 = vadd.f32 %v392, %v568
    %v570 = vpop.f32.mrb[0].mxu0
    %571 = vmatprep.mubr.bf16.mxu0 0
    %572 = vmatmul.mubr.bf16.gmra.mrb[0].mxu0 %v447
    %v573 = vpop.f32.mrb[0].mxu0
    %v574 = vadd.f32 %v392, %v573
    %v575 = vpop.f32.mrb[0].mxu0
    %v576 = vpop.f32.mrb[0].mxu0
    %v577 = vadd.f32 %v392, %v576
    %v578 = vpop.f32.mrb[0].mxu0
    %579 = vmatprep.mubr.bf16.mxu0 0
    %580 = vmatmul.mubr.bf16.gmra.mrb[0].mxu0 %v450
    %v581 = vpop.f32.mrb[0].mxu0
    %v582 = vadd.f32 %v392, %v581
    %v583 = vpop.f32.mrb[0].mxu0
    %v584 = vpop.f32.mrb[0].mxu0
    %v585 = vadd.f32 %v392, %v584
    %v586 = vpop.f32.mrb[0].mxu0
    %587 = vmatprep.mubr.bf16.mxu0 0
    %588 = vmatmul.mubr.bf16.gmra.mrb[0].mxu0 %v453
    %v589 = vpop.f32.mrb[0].mxu0
    %v590 = vadd.f32 %v392, %v589
    %v591 = vpop.f32.mrb[0].mxu0
    %v592 = vpop.f32.mrb[0].mxu0
    %v593 = vadd.f32 %v392, %v592
    %v594 = vpop.f32.mrb[0].mxu0
    %595 = vmatprep.mubr.bf16.mxu0 0
    %596 = vmatmul.mubr.bf16.gmra.mrb[0].mxu0 %v456
    %v597 = vpop.f32.mrb[0].mxu0
    %v598 = vadd.f32 %v392, %v597
    %v599 = vpop.f32.mrb[0].mxu0
    %v600 = vpop.f32.mrb[0].mxu0
    %v601 = vadd.f32 %v392, %v600
    %v602 = vpop.f32.mrb[0].mxu0
    %603 = vmatprep.mubr.bf16.mxu0 0
    %604 = vmatmul.mubr.bf16.gmra.mrb[0].mxu0 %v459
    %v605 = vpop.f32.mrb[0].mxu0
    %v606 = vadd.f32 %v392, %v605
    %v607 = vpop.f32.mrb[0].mxu0
    %v608 = vpop.f32.mrb[0].mxu0
    %v609 = vadd.f32 %v392, %v608
    %v610 = vpop.f32.mrb[0].mxu0
    %611 = vmatprep.mubr.bf16.mxu0 0
    %612 = vmatmul.mubr.bf16.gmra.mrb[0].mxu0 %v462
    %v613 = vpop.f32.mrb[0].mxu0
    %v614 = vadd.f32 %v392, %v613
    %v615 = vpop.f32.mrb[0].mxu0
    %v616 = vpop.f32.mrb[0].mxu0
    %v617 = vadd.f32 %v392, %v616
    %v618 = vpop.f32.mrb[0].mxu0
    %619 = vmatprep.mubr.bf16.mxu0 0
    %620 = vmatmul.mubr.bf16.gmra.mrb[0].mxu0 %v465
    %v621 = vpop.f32.mrb[0].mxu0
    %v622 = vadd.f32 %v392, %v621
    %v623 = vpop.f32.mrb[0].mxu0
    %v624 = vpop.f32.mrb[0].mxu0
    %v625 = vadd.f32 %v392, %v624
    %v626 = vpop.f32.mrb[0].mxu0
    %627 = vdwg.mxu0
    %v628 = vmax.f32 %v502, 0.0
    %v629 = vmax.f32 %v505, 0.0
    %v630 = vmax.f32 %v510, 0.0
    %v631 = vmax.f32 %v513, 0.0
    %v632 = vmax.f32 %v518, 0.0
    %v633 = vmax.f32 %v521, 0.0
    %v634 = vmax.f32 %v526, 0.0
    %v635 = vmax.f32 %v529, 0.0
    %v636 = vmax.f32 %v534, 0.0
    %v637 = vmax.f32 %v537, 0.0
    %v638 = vmax.f32 %v542, 0.0
    %v639 = vmax.f32 %v545, 0.0
    %v640 = vmax.f32 %v550, 0.0
    %v641 = vmax.f32 %v553, 0.0
    %v642 = vmax.f32 %v558, 0.0
    %v643 = vmax.f32 %v561, 0.0
    %v644 = vmax.f32 %v566, 0.0
    %v645 = vmax.f32 %v569, 0.0
    %v646 = vmax.f32 %v574, 0.0
    %v647 = vmax.f32 %v577, 0.0
    %v648 = vmax.f32 %v582, 0.0
    %v649 = vmax.f32 %v585, 0.0
    %v650 = vmax.f32 %v590, 0.0
    %v651 = vmax.f32 %v593, 0.0
    %v652 = vmax.f32 %v598, 0.0
    %v653 = vmax.f32 %v601, 0.0
    %v654 = vmax.f32 %v606, 0.0
    %v655 = vmax.f32 %v609, 0.0
    %v656 = vmax.f32 %v614, 0.0
    %v657 = vmax.f32 %v617, 0.0
    %v658 = vmax.f32 %v622, 0.0
    %v659 = vmax.f32 %v625, 0.0
    %v660 = vpack.c.bf16 %v629, %v628
    %v661 = vpack.c.bf16 %v631, %v630
    %v662 = vpack.c.bf16 %v633, %v632
    %v663 = vpack.c.bf16 %v635, %v634
    %v664 = vpack.c.bf16 %v637, %v636
    %v665 = vpack.c.bf16 %v639, %v638
    %v666 = vpack.c.bf16 %v641, %v640
    %v667 = vpack.c.bf16 %v643, %v642
    %v668 = vpack.c.bf16 %v645, %v644
    %v669 = vpack.c.bf16 %v647, %v646
    %v670 = vpack.c.bf16 %v649, %v648
    %v671 = vpack.c.bf16 %v651, %v650
    %v672 = vpack.c.bf16 %v653, %v652
    %v673 = vpack.c.bf16 %v655, %v654
    %v674 = vpack.c.bf16 %v657, %v656
    %v675 = vpack.c.bf16 %v659, %v658
    %v677 = vlaneseq
    %v678 = vshrl.u32 %v677, 7
    %v679 = vsub.s32 0, %v678
    %v680 = vrot.slane %v63, %v679
    %v690 = vunpack.c.l.b16 %v55
    %v691 = vunpack.c.l.b16 %v56
    %v692 = vunpack.c.l.b16 %v57
    %v693 = vunpack.c.l.b16 %v58
    %v694 = vunpack.c.l.b16 %v59
    %v695 = vunpack.c.l.b16 %v60
    %v696 = vunpack.c.l.b16 %v61
    %v697 = vunpack.c.l.b16 %v62
    %v698 = vpack.c.b16 %v691, %v690
    %v699 = vpack.c.b16 %v693, %v692
    %v700 = vpack.c.b16 %v695, %v694
    %v701 = vpack.c.b16 %v697, %v696
    %v707 = vsel %vm418, %v660, 0
    %v710 = vsel %vm418, %v661, 0
    %v713 = vsel %vm418, %v662, 0
    %v716 = vsel %vm418, %v663, 0
    %v719 = vsel %vm418, %v664, 0
    %v722 = vsel %vm418, %v665, 0
    %v725 = vsel %vm418, %v666, 0
    %v728 = vsel %vm418, %v667, 0
    %v731 = vsel %vm418, %v668, 0
    %v734 = vsel %vm418, %v669, 0
    %v737 = vsel %vm418, %v670, 0
    %v740 = vsel %vm418, %v671, 0
    %v743 = vsel %vm418, %v672, 0
    %v746 = vsel %vm418, %v673, 0
    %v749 = vsel %vm418, %v674, 0
    %v752 = vsel %vm418, %v675, 0
    %754 = vmatprep.subr.bf16.mxu0 0
    %755 = vmatpush1.bf16.msra.mxu0 %v698
    %756 = vmatprep.subr.bf16.mxu0 0
    %757 = vmatpush1.bf16.msra.mxu0 %v699
    %758 = vmatprep.subr.bf16.mxu0 0
    %759 = vmatpush1.bf16.msra.mxu0 %v700
    %760 = vmatprep.subr.bf16.mxu0 0
    %761 = vmatpush1.bf16.msra.mxu0 %v701
    %762 = vmatprep.subr.bf16.mxu0 0
    %763 = vmatpush1.bf16.msra.mxu0 0
    %764 = vmatprep.subr.bf16.mxu0 0
    %765 = vmatpush1.bf16.msra.mxu0 0
    %766 = vmatprep.subr.bf16.mxu0 0
    %767 = vmatpush1.bf16.msra.mxu0 0
    %768 = vmatprep.subr.bf16.mxu0 0
    %769 = vmatpush1.bf16.msra.mxu0 0
    %770 = vmatprep.subr.bf16.mxu0 0
    %771 = vmatpush1.bf16.msra.mxu0 0
    %772 = vmatprep.subr.bf16.mxu0 0
    %773 = vmatpush1.bf16.msra.mxu0 0
    %774 = vmatprep.subr.bf16.mxu0 0
    %775 = vmatpush1.bf16.msra.mxu0 0
    %776 = vmatprep.subr.bf16.mxu0 0
    %777 = vmatpush1.bf16.msra.mxu0 0
    %778 = vmatprep.subr.bf16.mxu0 0
    %779 = vmatpush1.bf16.msra.mxu0 0
    %780 = vmatprep.subr.bf16.mxu0 0
    %781 = vmatpush1.bf16.msra.mxu0 0
    %782 = vmatprep.subr.bf16.mxu0 0
    %783 = vmatpush1.bf16.msra.mxu0 0
    %784 = vmatprep.subr.bf16.mxu0 0
    %785 = vmatpush1.bf16.msra.mxu0 0
    %786 = vmatprep.mubr.bf16.mxu0 0
    %787 = vmatmul.mubr.bf16.gmra.mrb[0].mxu0 %v707
    %v788 = vpop.f32.mrb[0].mxu0
    %v789 = vadd.f32 %v680, %v788
    %v790 = vpop.f32.mrb[0].mxu0
    %v791 = vpop.f32.mrb[0].mxu0
    %v792 = vadd.f32 %v680, %v791
    %v793 = vpop.f32.mrb[0].mxu0
    %794 = vmatprep.mubr.bf16.mxu0 0
    %795 = vmatmul.mubr.bf16.gmra.mrb[0].mxu0 %v710
    %v796 = vpop.f32.mrb[0].mxu0
    %v797 = vadd.f32 %v680, %v796
    %v798 = vpop.f32.mrb[0].mxu0
    %v799 = vpop.f32.mrb[0].mxu0
    %v800 = vadd.f32 %v680, %v799
    %v801 = vpop.f32.mrb[0].mxu0
    %802 = vmatprep.mubr.bf16.mxu0 0
    %803 = vmatmul.mubr.bf16.gmra.mrb[0].mxu0 %v713
    %v804 = vpop.f32.mrb[0].mxu0
    %v805 = vadd.f32 %v680, %v804
    %v806 = vpop.f32.mrb[0].mxu0
    %v807 = vpop.f32.mrb[0].mxu0
    %v808 = vadd.f32 %v680, %v807
    %v809 = vpop.f32.mrb[0].mxu0
    %810 = vmatprep.mubr.bf16.mxu0 0
    %811 = vmatmul.mubr.bf16.gmra.mrb[0].mxu0 %v716
    %v812 = vpop.f32.mrb[0].mxu0
    %v813 = vadd.f32 %v680, %v812
    %v814 = vpop.f32.mrb[0].mxu0
    %v815 = vpop.f32.mrb[0].mxu0
    %v816 = vadd.f32 %v680, %v815
    %v817 = vpop.f32.mrb[0].mxu0
    %818 = vmatprep.mubr.bf16.mxu0 0
    %819 = vmatmul.mubr.bf16.gmra.mrb[0].mxu0 %v719
    %v820 = vpop.f32.mrb[0].mxu0
    %v821 = vadd.f32 %v680, %v820
    %v822 = vpop.f32.mrb[0].mxu0
    %v823 = vpop.f32.mrb[0].mxu0
    %v824 = vadd.f32 %v680, %v823
    %v825 = vpop.f32.mrb[0].mxu0
    %826 = vmatprep.mubr.bf16.mxu0 0
    %827 = vmatmul.mubr.bf16.gmra.mrb[0].mxu0 %v722
    %v828 = vpop.f32.mrb[0].mxu0
    %v829 = vadd.f32 %v680, %v828
    %v830 = vpop.f32.mrb[0].mxu0
    %v831 = vpop.f32.mrb[0].mxu0
    %v832 = vadd.f32 %v680, %v831
    %v833 = vpop.f32.mrb[0].mxu0
    %834 = vmatprep.mubr.bf16.mxu0 0
    %835 = vmatmul.mubr.bf16.gmra.mrb[0].mxu0 %v725
    %v836 = vpop.f32.mrb[0].mxu0
    %v837 = vadd.f32 %v680, %v836
    %v838 = vpop.f32.mrb[0].mxu0
    %v839 = vpop.f32.mrb[0].mxu0
    %v840 = vadd.f32 %v680, %v839
    %v841 = vpop.f32.mrb[0].mxu0
    %842 = vmatprep.mubr.bf16.mxu0 0
    %843 = vmatmul.mubr.bf16.gmra.mrb[0].mxu0 %v728
    %v844 = vpop.f32.mrb[0].mxu0
    %v845 = vadd.f32 %v680, %v844
    %v846 = vpop.f32.mrb[0].mxu0
    %v847 = vpop.f32.mrb[0].mxu0
    %v848 = vadd.f32 %v680, %v847
    %v849 = vpop.f32.mrb[0].mxu0
    %850 = vmatprep.mubr.bf16.mxu0 0
    %851 = vmatmul.mubr.bf16.gmra.mrb[0].mxu0 %v731
    %v852 = vpop.f32.mrb[0].mxu0
    %v853 = vadd.f32 %v680, %v852
    %v854 = vpop.f32.mrb[0].mxu0
    %v855 = vpop.f32.mrb[0].mxu0
    %v856 = vadd.f32 %v680, %v855
    %v857 = vpop.f32.mrb[0].mxu0
    %858 = vmatprep.mubr.bf16.mxu0 0
    %859 = vmatmul.mubr.bf16.gmra.mrb[0].mxu0 %v734
    %v860 = vpop.f32.mrb[0].mxu0
    %v861 = vadd.f32 %v680, %v860
    %v862 = vpop.f32.mrb[0].mxu0
    %v863 = vpop.f32.mrb[0].mxu0
    %v864 = vadd.f32 %v680, %v863
    %v865 = vpop.f32.mrb[0].mxu0
    %866 = vmatprep.mubr.bf16.mxu0 0
    %867 = vmatmul.mubr.bf16.gmra.mrb[0].mxu0 %v737
    %v868 = vpop.f32.mrb[0].mxu0
    %v869 = vadd.f32 %v680, %v868
    %v870 = vpop.f32.mrb[0].mxu0
    %v871 = vpop.f32.mrb[0].mxu0
    %v872 = vadd.f32 %v680, %v871
    %v873 = vpop.f32.mrb[0].mxu0
    %874 = vmatprep.mubr.bf16.mxu0 0
    %875 = vmatmul.mubr.bf16.gmra.mrb[0].mxu0 %v740
    %v876 = vpop.f32.mrb[0].mxu0
    %v877 = vadd.f32 %v680, %v876
    %v878 = vpop.f32.mrb[0].mxu0
    %v879 = vpop.f32.mrb[0].mxu0
    %v880 = vadd.f32 %v680, %v879
    %v881 = vpop.f32.mrb[0].mxu0
    %882 = vmatprep.mubr.bf16.mxu0 0
    %883 = vmatmul.mubr.bf16.gmra.mrb[0].mxu0 %v743
    %v884 = vpop.f32.mrb[0].mxu0
    %v885 = vadd.f32 %v680, %v884
    %v886 = vpop.f32.mrb[0].mxu0
    %v887 = vpop.f32.mrb[0].mxu0
    %v888 = vadd.f32 %v680, %v887
    %v889 = vpop.f32.mrb[0].mxu0
    %890 = vmatprep.mubr.bf16.mxu0 0
    %891 = vmatmul.mubr.bf16.gmra.mrb[0].mxu0 %v746
    %v892 = vpop.f32.mrb[0].mxu0
    %v893 = vadd.f32 %v680, %v892
    %v894 = vpop.f32.mrb[0].mxu0
    %v895 = vpop.f32.mrb[0].mxu0
    %v896 = vadd.f32 %v680, %v895
    %v897 = vpop.f32.mrb[0].mxu0
    %898 = vmatprep.mubr.bf16.mxu0 0
    %899 = vmatmul.mubr.bf16.gmra.mrb[0].mxu0 %v749
    %v900 = vpop.f32.mrb[0].mxu0
    %v901 = vadd.f32 %v680, %v900
    %v902 = vpop.f32.mrb[0].mxu0
    %v903 = vpop.f32.mrb[0].mxu0
    %v904 = vadd.f32 %v680, %v903
    %v905 = vpop.f32.mrb[0].mxu0
    %906 = vmatprep.mubr.bf16.mxu0 0
    %907 = vmatmul.mubr.bf16.gmra.mrb[0].mxu0 %v752
    %v908 = vpop.f32.mrb[0].mxu0
    %v909 = vadd.f32 %v680, %v908
    %v910 = vpop.f32.mrb[0].mxu0
    %v911 = vpop.f32.mrb[0].mxu0
    %v912 = vadd.f32 %v680, %v911
    %v913 = vpop.f32.mrb[0].mxu0
    %914 = vdwg.mxu0
    %vm915 = vcmask 31744
    %916 = vst.msk [vmem:[#allocation4] sm:$0xff] %vm915, %v789
    %917 = vst.msk [vmem:[#allocation4 + $0x8] sm:$0xff] %vm915, %v792
    %918 = vst.msk [vmem:[#allocation4 + $0x10] sm:$0xff] %vm915, %v797
    %919 = vst.msk [vmem:[#allocation4 + $0x18] sm:$0xff] %vm915, %v800
    %920 = vst.msk [vmem:[#allocation4 + $0x20] sm:$0xff] %vm915, %v805
    %921 = vst.msk [vmem:[#allocation4 + $0x28] sm:$0xff] %vm915, %v808
    %922 = vst.msk [vmem:[#allocation4 + $0x30] sm:$0xff] %vm915, %v813
    %923 = vst.msk [vmem:[#allocation4 + $0x38] sm:$0xff] %vm915, %v816
    %924 = vst.msk [vmem:[#allocation4 + $0x40] sm:$0xff] %vm915, %v821
    %925 = vst.msk [vmem:[#allocation4 + $0x48] sm:$0xff] %vm915, %v824
    %926 = vst.msk [vmem:[#allocation4 + $0x50] sm:$0xff] %vm915, %v829
    %927 = vst.msk [vmem:[#allocation4 + $0x58] sm:$0xff] %vm915, %v832
    %928 = vst.msk [vmem:[#allocation4 + $0x60] sm:$0xff] %vm915, %v837
    %929 = vst.msk [vmem:[#allocation4 + $0x68] sm:$0xff] %vm915, %v840
    %930 = vst.msk [vmem:[#allocation4 + $0x70] sm:$0xff] %vm915, %v845
    %931 = vst.msk [vmem:[#allocation4 + $0x78] sm:$0xff] %vm915, %v848
    %932 = vst.msk [vmem:[#allocation4 + $0x80] sm:$0xff] %vm915, %v853
    %933 = vst.msk [vmem:[#allocation4 + $0x88] sm:$0xff] %vm915, %v856
    %934 = vst.msk [vmem:[#allocation4 + $0x90] sm:$0xff] %vm915, %v861
    %935 = vst.msk [vmem:[#allocation4 + $0x98] sm:$0xff] %vm915, %v864
    %936 = vst.msk [vmem:[#allocation4 + $0xa0] sm:$0xff] %vm915, %v869
    %937 = vst.msk [vmem:[#allocation4 + $0xa8] sm:$0xff] %vm915, %v872
    %938 = vst.msk [vmem:[#allocation4 + $0xb0] sm:$0xff] %vm915, %v877
    %939 = vst.msk [vmem:[#allocation4 + $0xb8] sm:$0xff] %vm915, %v880
    %940 = vst.msk [vmem:[#allocation4 + $0xc0] sm:$0xff] %vm915, %v885
    %941 = vst.msk [vmem:[#allocation4 + $0xc8] sm:$0xff] %vm915, %v888
    %942 = vst.msk [vmem:[#allocation4 + $0xd0] sm:$0xff] %vm915, %v893
    %943 = vst.msk [vmem:[#allocation4 + $0xd8] sm:$0xff] %vm915, %v896
    %944 = vst.msk [vmem:[#allocation4 + $0xe0] sm:$0xff] %vm915, %v901
    %945 = vst.msk [vmem:[#allocation4 + $0xe8] sm:$0xff] %vm915, %v904
    %946 = vst.msk [vmem:[#allocation4 + $0xf0] sm:$0xff] %vm915, %v909
    %947 = vst.msk [vmem:[#allocation4 + $0xf8] sm:$0xff] %vm915, %v912
    // Predicated region
    $region34: #{tpu_custom_call.1} parent=1 // pred_check
      _
    $region35: #{tpu_custom_call.1} parent=1 // pred_check_branch
      %949 = sbr.rel (0) target = $region37
    $region36: #{tpu_custom_call.1} parent=1 // pred_region
      // Predicated region
      $region38: #{tpu_custom_call.1} parent=36 // pred_check
        _
      $region39: #{tpu_custom_call.1} parent=36 // pred_check_branch
        %951 = sbr.rel (0) target = $region41
      $region40: #{tpu_custom_call.1} parent=36 // pred_region
        // Predicated region
        $region42: #{tpu_custom_call.1} parent=40 // pred_check
          _
        $region43: #{tpu_custom_call.1} parent=40 // pred_check_branch
          %953 = sbr.rel (0) target = $region45
        $region44: #{tpu_custom_call.1} parent=40 // pred_region
          // Predicated region
          $region57: #{tpu_custom_call.1} parent=44 // pred_check
            _
          $region58: #{tpu_custom_call.1} parent=44 // pred_check_branch
            %968 = sbr.rel (0) target = $region60
          $region59: #{tpu_custom_call.1} parent=44 // pred_region
            loop: start=0, step=1, limit=1
            $region61: #{tpu_custom_call.1} parent=59 // loop_pre_header
              _
            $region62: #{tpu_custom_call.1} parent=59 // loop_header
              %s970 = sphi 0, %s974
              %p971 = scmp.ge.s32.totalorder %s970, 1
              %s975 = sphi [#allocation4], [#allocation4]
              %s976 = sphi %s7, %s7
            $region63: #{tpu_custom_call.1} parent=59 // loop_header_branch
              %973 = sbr.rel (%p971) target = $region67
            $region64: #{tpu_custom_call.1} parent=59 // loop_body
              %v977 = vld [vmem:[%s975] sm:$0xff]
              %978 = vst [vmem:[%s976] sm:$0xff] %v977
            $region65: #{tpu_custom_call.1} parent=59 // loop_footer
              %s974 = sadd.s32 1, %s970
            $region66: #{tpu_custom_call.1} parent=59 // loop_footer_branch
              %969 = sbr.rel target = $region62
            $region67: #{tpu_custom_call.1} parent=59 // loop_exit
              _
          $region60: #{tpu_custom_call.1} parent=44 // pred_fallthru
            _
          // Predicated region
          $region68: #{tpu_custom_call.1} parent=44 // pred_check
            _
          $region69: #{tpu_custom_call.1} parent=44 // pred_check_branch
            %980 = sbr.rel target = $region71
          $region70: #{tpu_custom_call.1} parent=44 // pred_region
            _
          $region71: #{tpu_custom_call.1} parent=44 // pred_fallthru
            _
        $region45: #{tpu_custom_call.1} parent=40 // pred_fallthru
          _
        // Predicated region
        $region46: #{tpu_custom_call.1} parent=40 // pred_check
          _
        $region47: #{tpu_custom_call.1} parent=40 // pred_check_branch
          %955 = sbr.rel target = $region49
        $region48: #{tpu_custom_call.1} parent=40 // pred_region
          loop: start=0, step=1, limit=1
          $region50: #{tpu_custom_call.1} parent=48 // loop_pre_header
            _
          $region51: #{tpu_custom_call.1} parent=48 // loop_header
            %s958 = sphi 0, %s962
            %p959 = scmp.ge.s32.totalorder %s958, 1
            %s963 = sphi [#allocation4], [#allocation4]
            %s964 = sphi %s7, %s7
          $region52: #{tpu_custom_call.1} parent=48 // loop_header_branch
            %961 = sbr.rel (%p959) target = $region56
          $region53: #{tpu_custom_call.1} parent=48 // loop_body
            %v965 = vld [vmem:[%s963] sm:$0xff]
            %966 = vst [vmem:[%s964] sm:$0xff] %v965
          $region54: #{tpu_custom_call.1} parent=48 // loop_footer
            %s962 = sadd.s32 1, %s958
          $region55: #{tpu_custom_call.1} parent=48 // loop_footer_branch
            %957 = sbr.rel target = $region51
          $region56: #{tpu_custom_call.1} parent=48 // loop_exit
            _
        $region49: #{tpu_custom_call.1} parent=40 // pred_fallthru
          _
      $region41: #{tpu_custom_call.1} parent=36 // pred_fallthru
        _
      %981 = vnop
    $region37: #{tpu_custom_call.1} parent=1 // pred_fallthru
      _
    // Predicated region
    $region72: #{tpu_custom_call.1} parent=1 // pred_check
      _
    $region73: #{tpu_custom_call.1} parent=1 // pred_check_branch
      %983 = sbr.rel (0) target = $region75
    $region74: #{tpu_custom_call.1} parent=1 // pred_region
      _
    $region75: #{tpu_custom_call.1} parent=1 // pred_fallthru
      _
    %984 = vsyncpa [#allocation3], 1

</llo_original>
